<compile_context>
chip_gen: v7x
topology: tpu7x:2x2x1
jax: 0.10.0
libtpu: 0.0.40
codegen_flags: <defaults>
</compile_context>

<pallas_src>
import math

import jax
import jax.numpy as jnp
from jax import lax
from jax.experimental import pallas as pl
from jax.experimental.pallas import tpu as pltpu


# ----------------------------------------------------------------------------
# helpers
# ----------------------------------------------------------------------------
def _pick_tile(dim, pref):
    """Largest tile <= pref dividing `dim`; prefers multiples of 128, then 8."""
    if dim <= pref:
        return dim
    for t in range(pref - pref % 128, 127, -128):
        if dim % t == 0:
            return t
    for t in range(pref - pref % 8, 7, -8):
        if dim % t == 0:
            return t
    # TODO(synk): pad awkward dims instead of falling back to a full-dim block.
    return dim


def _mosaic_params(semantics, block_bytes):
    """CompilerParams with an explicit VMEM budget (capped for v7x's 64 MiB)."""
    vmem = int(min(max(4 * block_bytes, 32 << 20), 48 << 20))
    return pltpu.CompilerParams(dimension_semantics=semantics,
                                vmem_limit_bytes=vmem)


# ----------------------------------------------------------------------------
# One-time parameter preparation: PyTorch (out, in) weights -> head-major,
# 1/sqrt(d_k) folded into the Q projection.  Runs outside the forward pass.
# ----------------------------------------------------------------------------
def prepare_params(params, h):
    d_model = params["wq"].shape[0]
    assert d_model % h == 0
    d_k = d_model // h
    scale = 1.0 / math.sqrt(d_k)

    def head_major(w):  # (d_out, d_in) -> (h, d_in, d_k)
        return jnp.transpose(w.T.reshape(w.shape[1], h, d_k), (1, 0, 2))

    def head_bias(b):   # (d_out,) -> (h, 1, d_k)
        return b.reshape(h, 1, d_k)

    return {
        "h": h, "d_k": d_k, "d_model": d_model,
        "wq_hm": head_major(params["wq"]) * scale,
        "bq_hm": head_bias(params["bq"]) * scale,
        "wk_hm": head_major(params["wk"]),
        "bk_hm": head_bias(params["bk"]),
        "wv_hm": head_major(params["wv"]),
        "bv_hm": head_bias(params["bv"]),
        # Wo^T rows are in packed (head, d_k) order -> (h, d_k, d_model)
        "wo_hm": params["wo"].T.reshape(h, d_k, d_model),
        "bo": params["bo"].reshape(1, d_model),
    }


# ----------------------------------------------------------------------------
# Kernel 1a: fused self-attention QKV projection, head-major outputs.
#   grid = (N//tn, h); x block stays resident across the inner head axis.
# ----------------------------------------------------------------------------
def _qkv_proj_kernel(x_ref, wq_ref, wk_ref, wv_ref, bq_ref, bk_ref, bv_ref,
                     q_ref, k_ref, v_ref):
    x = x_ref[...]                                           # (tn, d_in)
    q_ref[0] = (jnp.dot(x, wq_ref[0], preferred_element_type=jnp.float32)
                + bq_ref[0]).astype(q_ref.dtype)
    k_ref[0] = (jnp.dot(x, wk_ref[0], preferred_element_type=jnp.float32)
                + bk_ref[0]).astype(k_ref.dtype)
    v_ref[0] = (jnp.dot(x, wv_ref[0], preferred_element_type=jnp.float32)
                + bv_ref[0]).astype(v_ref.dtype)


def qkv_projection(x, prep, *, row_tile=256):
    """x: (N, d_in) -> (q, k, v) each (h, N, d_k), head-major."""
    n, d_in = x.shape
    h, d_k = prep["h"], prep["d_k"]
    tn = _pick_tile(n, row_tile)

    x_spec = pl.BlockSpec((tn, d_in), lambda i, hd: (i, 0))
    w_spec = pl.BlockSpec((1, d_in, d_k), lambda i, hd: (hd, 0, 0))
    b_spec = pl.BlockSpec((1, 1, d_k), lambda i, hd: (hd, 0, 0))
    o_spec = pl.BlockSpec((1, tn, d_k), lambda i, hd: (hd, i, 0))
    out_sds = jax.ShapeDtypeStruct((h, n, d_k), x.dtype)

    block_bytes = 4 * (tn * d_in + 3 * d_in * d_k + 3 * d_k + 3 * tn * d_k)
    return pl.pallas_call(
        _qkv_proj_kernel,
        out_shape=(out_sds, out_sds, out_sds),
        grid=(pl.cdiv(n, tn), h),
        in_specs=[x_spec, w_spec, w_spec, w_spec, b_spec, b_spec, b_spec],
        out_specs=(o_spec, o_spec, o_spec),
        compiler_params=_mosaic_params(("parallel", "parallel"), block_bytes),
    )(x, prep["wq_hm"], prep["wk_hm"], prep["wv_hm"],
      prep["bq_hm"], prep["bk_hm"], prep["bv_hm"])


# ----------------------------------------------------------------------------
# Kernel 1b: single head-major projection (cross-attention path).
# ----------------------------------------------------------------------------
def _head_proj_kernel(x_ref, w_ref, b_ref, o_ref):
    o_ref[0] = (jnp.dot(x_ref[...], w_ref[0],
                        preferred_element_type=jnp.float32)
                + b_ref[0]).astype(o_ref.dtype)


def head_projection(x, w_hm, b_hm, *, row_tile=256):
    """x: (N, d_in), w_hm: (h, d_in, d_k), b_hm: (h, 1, d_k) -> (h, N, d_k)."""
    n, d_in = x.shape
    h, _, d_k = w_hm.shape
    tn = _pick_tile(n, row_tile)

    block_bytes = 4 * (tn * d_in + d_in * d_k + d_k + tn * d_k)
    return pl.pallas_call(
        _head_proj_kernel,
        out_shape=jax.ShapeDtypeStruct((h, n, d_k), x.dtype),
        grid=(pl.cdiv(n, tn), h),
        in_specs=[
            pl.BlockSpec((tn, d_in), lambda i, hd: (i, 0)),
            pl.BlockSpec((1, d_in, d_k), lambda i, hd: (hd, 0, 0)),
            pl.BlockSpec((1, 1, d_k), lambda i, hd: (hd, 0, 0)),
        ],
        out_specs=pl.BlockSpec((1, tn, d_k), lambda i, hd: (hd, i, 0)),
        compiler_params=_mosaic_params(("parallel", "parallel"), block_bytes),
    )(x, w_hm, b_hm)


# ----------------------------------------------------------------------------
# Kernel 2: head-major flash attention.
#   q,k,v: (G, S, d_k) with G = h*B.  grid = (G, Sq//tq, Skv//tk),
#   kv axis last + 'arbitrary' (online-softmax accumulators in VMEM scratch).
#   Softmax scale is already folded into q.
# ----------------------------------------------------------------------------
def _flash_mha_kernel(q_ref, k_ref, v_ref, o_ref, m_ref, l_ref, acc_ref):
    ki = pl.program_id(2)

    @pl.when(ki == 0)
    def _():
        m_ref[...] = jnp.full(m_ref.shape, -jnp.inf, jnp.float32)
        l_ref[...] = jnp.zeros(l_ref.shape, jnp.float32)
        acc_ref[...] = jnp.zeros(acc_ref.shape, jnp.float32)

    q = q_ref[0]                                             # (tq, d_k)
    k = k_ref[0]                                             # (tk, d_k)
    v = v_ref[0]                                             # (tk, d_k)

    # scores (tq, tk); contraction on d_k without materializing k.T
    s = lax.dot_general(q, k, (((1,), (1,)), ((), ())),
                        preferred_element_type=jnp.float32)

    m_prev = m_ref[...]                                      # (tq, 1)
    m_new = jnp.maximum(m_prev, jnp.max(s, axis=-1, keepdims=True))
    alpha = jnp.exp(m_prev - m_new)
    p = jnp.exp(s - m_new)                                   # (tq, tk) f32

    l_ref[...] = alpha * l_ref[...] + jnp.sum(p, axis=-1, keepdims=True)
    acc_ref[...] = alpha * acc_ref[...] + jnp.dot(
        p.astype(v.dtype), v, preferred_element_type=jnp.float32)
    m_ref[...] = m_new

    @pl.when(ki == pl.num_programs(2) - 1)
    def _():
        o_ref[0] = (acc_ref[...] / l_ref[...]).astype(o_ref.dtype)


def flash_mha(q, k, v, *, q_tile=256, kv_tile=256):
    """q: (G, Sq, d_k), k/v: (G, Skv, d_k) -> (G, Sq, d_k)."""
    G, Sq, d_k = q.shape
    _, Skv, _ = k.shape
    tq = _pick_tile(Sq, q_tile)
    tk = _pick_tile(Skv, kv_tile)

    q_spec = pl.BlockSpec((1, tq, d_k), lambda g, qi, ki: (g, qi, 0))
    kv_spec = pl.BlockSpec((1, tk, d_k), lambda g, qi, ki: (g, ki, 0))

    block_bytes = 4 * (2 * tq * d_k + 2 * tk * d_k + tq * tk
                       + tq * (d_k + 2))
    return pl.pallas_call(
        _flash_mha_kernel,
        out_shape=jax.ShapeDtypeStruct((G, Sq, d_k), q.dtype),
        grid=(G, pl.cdiv(Sq, tq), pl.cdiv(Skv, tk)),
        in_specs=[q_spec, kv_spec, kv_spec],
        out_specs=pl.BlockSpec((1, tq, d_k), lambda g, qi, ki: (g, qi, 0)),
        scratch_shapes=[
            pltpu.VMEM((tq, 1), jnp.float32),     # running max  m
            pltpu.VMEM((tq, 1), jnp.float32),     # running sum  l
            pltpu.VMEM((tq, d_k), jnp.float32),   # unnormalized accumulator
        ],
        compiler_params=_mosaic_params(
            ("parallel", "parallel", "arbitrary"), block_bytes),
    )(q, k, v)


# ----------------------------------------------------------------------------
# Kernel 3: output projection from head-major input, reducing over heads
#   (equivalent to the packed x @ Wo^T + bo without the head->packed transpose).
#   grid = (N//tn, h); head axis last + 'arbitrary' with f32 accumulator.
# ----------------------------------------------------------------------------
def _out_proj_kernel(x_ref, w_ref, b_ref, o_ref, acc_ref):
    hd = pl.program_id(1)

    @pl.when(hd == 0)
    def _():
        acc_ref[...] = jnp.zeros(acc_ref.shape, jnp.float32)

    acc_ref[...] += jnp.dot(x_ref[0], w_ref[0],
                            preferred_element_type=jnp.float32)

    @pl.when(hd == pl.num_programs(1) - 1)
    def _():
        o_ref[...] = (acc_ref[...] + b_ref[...]).astype(o_ref.dtype)


def out_projection(x_hm, w_hm, b, *, row_tile=256):
    """x_hm: (h, N, d_k), w_hm: (h, d_k, d_model), b: (1, d_model) -> (N, d_model)."""
    h, n, d_k = x_hm.shape
    d_model = w_hm.shape[2]
    tn = _pick_tile(n, row_tile)

    block_bytes = 4 * (tn * d_k + d_k * d_model + d_model + 2 * tn * d_model)
    return pl.pallas_call(
        _out_proj_kernel,
        out_shape=jax.ShapeDtypeStruct((n, d_model), x_hm.dtype),
        grid=(pl.cdiv(n, tn), h),
        in_specs=[
            pl.BlockSpec((1, tn, d_k), lambda i, hd: (hd, i, 0)),
            pl.BlockSpec((1, d_k, d_model), lambda i, hd: (hd, 0, 0)),
            pl.BlockSpec((1, d_model), lambda i, hd: (0, 0)),
        ],
        out_specs=pl.BlockSpec((tn, d_model), lambda i, hd: (i, 0)),
        scratch_shapes=[pltpu.VMEM((tn, d_model), jnp.float32)],
        compiler_params=_mosaic_params(("parallel", "arbitrary"), block_bytes),
    )(x_hm, w_hm, b)


# ----------------------------------------------------------------------------
# MultiHeadAttention forward (eval mode: mask=None, p=None, dropout=identity)
# ----------------------------------------------------------------------------
def multi_head_attention(prep, query, key, value):
    B, Sq, d_model = query.shape
    Skv = key.shape[1]
    h, d_k = prep["h"], prep["d_k"]

    xq = query.reshape(B * Sq, d_model)
    if (query is key) and (key is value):
        # Self-attention: one fused kernel, three head-major outputs.
        q, k, v = qkv_projection(xq, prep)
    else:
        q = head_projection(xq, prep["wq_hm"], prep["bq_hm"])
        k = head_projection(key.reshape(B * Skv, d_model),
                            prep["wk_hm"], prep["bk_hm"])
        v = head_projection(value.reshape(B * Skv, d_model),
                            prep["wv_hm"], prep["bv_hm"])

    # (h, B*S, d_k) -> (h*B, S, d_k): free row-major reshape, no data movement.
    q = q.reshape(h * B, Sq, d_k)
    k = k.reshape(h * B, Skv, d_k)
    v = v.reshape(h * B, Skv, d_k)

    x = flash_mha(q, k, v)                           # (h*B, Sq, d_k)
    x = x.reshape(h, B * Sq, d_k)                    # back to head-major, free

    out = out_projection(x, prep["wo_hm"], prep["bo"])
    return out.reshape(B, Sq, d_model)


# ----------------------------------------------------------------------------
# Pure-JAX reference (matches the PyTorch module, eval mode)
# ----------------------------------------------------------------------------
def reference(params, query, key, value, h):
    B, S, d_model = query.shape
    d_k = d_model // h

    def proj(x, w, b):
        y = x @ w.T + b
        return y.reshape(B, -1, h, d_k).transpose(0, 2, 1, 3)

    q = proj(query, params["wq"], params["bq"])
    k = proj(key, params["wk"], params["bk"])
    v = proj(value, params["wv"], params["bv"])
    scores = jnp.einsum("bhqd,bhkd->bhqk", q, k) / math.sqrt(d_k)
    p = jax.nn.softmax(scores, axis=-1)
    x = jnp.einsum("bhqk,bhkd->bhqd", p, v)
    x = x.transpose(0, 2, 1, 3).reshape(B, S, d_model)
    return x @ params["wo"].T + params["bo"]


if __name__ == "__main__":
    B, S, d_model, h = 2, 8, 32, 4

    key0 = jax.random.PRNGKey(0)
    ks = jax.random.split(key0, 12)

    def xavier(k, shape):
        fan_in, fan_out = shape[1], shape[0]
        std = math.sqrt(2.0 / (fan_in + fan_out))
        return (std * jax.random.normal(k, shape)).astype(jnp.float32)

    params = {
        "wq": xavier(ks[0], (d_model, d_model)),
        "bq": 0.01 * jax.random.normal(ks[1], (d_model,)).astype(jnp.float32),
        "wk": xavier(ks[2], (d_model, d_model)),
        "bk": 0.01 * jax.random.normal(ks[3], (d_model,)).astype(jnp.float32),
        "wv": xavier(ks[4], (d_model, d_model)),
        "bv": 0.01 * jax.random.normal(ks[5], (d_model,)).astype(jnp.float32),
        "wo": xavier(ks[6], (d_model, d_model)),
        "bo": 0.01 * jax.random.normal(ks[7], (d_model,)).astype(jnp.float32),
    }

    query = jax.random.normal(ks[8], (B, S, d_model), dtype=jnp.float32)
    key_in = jax.random.normal(ks[9], (B, S, d_model), dtype=jnp.float32)
    value = jax.random.normal(ks[10], (B, S, d_model), dtype=jnp.float32)

    # One-time param prep (transposes / head-major reshape / scale folding).
    prep = prepare_params(params, h)

    # Cross-attention path (distinct q/k/v -> three head-major projections).
    out = multi_head_attention(prep, query, key_in, value)
    out = jax.block_until_ready(out)
    ref = reference(params, query, key_in, value, h)
    assert out.shape == (B, S, d_model)
    assert jnp.allclose(out, ref, atol=2e-3, rtol=2e-3), "mismatch vs reference"

    # Self-attention path (same tensor -> fused QKV kernel, 3 outputs).
    out_sa = multi_head_attention(prep, query, query, query)
    out_sa = jax.block_until_ready(out_sa)
    ref_sa = reference(params, query, query, query, h)
    assert jnp.allclose(out_sa, ref_sa, atol=2e-3, rtol=2e-3), "mismatch (self-attn)"

    print("KERNEL_OK")
</pallas_src>

<mosaic_0001>
module attributes {stable_mosaic.version = 11 : i64} {
  func.func @_head_proj_kernel(%arg0: i32, %arg1: i32, %arg2: memref<16x32xf32, #tpu.memory_space<vmem>>, %arg3: memref<1x32x8xf32, #tpu.memory_space<vmem>>, %arg4: memref<1x1x8xf32, #tpu.memory_space<vmem>>, %arg5: memref<1x16x8xf32, #tpu.memory_space<vmem>>) attributes {dimension_semantics = [#tpu.dimension_semantics<parallel>, #tpu.dimension_semantics<parallel>], iteration_bounds = array<i64: 1, 4>, scalar_prefetch = 0 : i64, scratch_operands = 0 : i64, tpu.core_type = #tpu.core_type<tc>, window_params = [{transform_indices = @transform_0, window_bounds = array<i64: 16, 32>}, {transform_indices = @transform_1, window_bounds = array<i64: 1, 32, 8>}, {transform_indices = @transform_2, window_bounds = array<i64: 1, 1, 8>}, {transform_indices = @transform_3, window_bounds = array<i64: 1, 16, 8>}]} {
    %c0 = arith.constant 0 : index
    %c0_0 = arith.constant 0 : index
    %0 = vector.load %arg2[%c0, %c0_0] : memref<16x32xf32, #tpu.memory_space<vmem>>, vector<16x32xf32>
    %c0_1 = arith.constant 0 : index
    %c0_2 = arith.constant 0 : index
    %c0_3 = arith.constant 0 : index
    %1 = vector.load %arg3[%c0_1, %c0_2, %c0_3] : memref<1x32x8xf32, #tpu.memory_space<vmem>>, vector<1x32x8xf32>
    %2 = vector.shape_cast %1 : vector<1x32x8xf32> to vector<32x8xf32>
    %cst = arith.constant dense<0.000000e+00> : vector<16x8xf32>
    %3 = tpu.matmul %0, %2, %cst {dimension_numbers = #tpu.dot_dimension_numbers<[1], [0], [0], [1], [0, 0, 1, 1], [], []>} : vector<16x32xf32>, vector<32x8xf32>, vector<16x8xf32> -> vector<16x8xf32>
    %c0_4 = arith.constant 0 : index
    %c0_5 = arith.constant 0 : index
    %c0_6 = arith.constant 0 : index
    %4 = vector.load %arg4[%c0_4, %c0_5, %c0_6] : memref<1x1x8xf32, #tpu.memory_space<vmem>>, vector<1x1x8xf32>
    %5 = vector.shape_cast %4 : vector<1x1x8xf32> to vector<1x8xf32>
    %6 = vector.broadcast %5 : vector<1x8xf32> to vector<16x8xf32>
    %7 = arith.addf %3, %6 : vector<16x8xf32>
    %c0_7 = arith.constant 0 : index
    %c0_8 = arith.constant 0 : index
    %c0_9 = arith.constant 0 : index
    %8 = vector.load %arg5[%c0_7, %c0_8, %c0_9] : memref<1x16x8xf32, #tpu.memory_space<vmem>>, vector<1x16x8xf32>
    %9 = vector.shape_cast %8 : vector<1x16x8xf32> to vector<16x8xf32>
    %10 = vector.shape_cast %7 : vector<16x8xf32> to vector<1x16x8xf32>
    tpu.vector_store %arg5[%c0_7, %c0_8, %c0_9], %10 {strides = array<i32>} : memref<1x16x8xf32, #tpu.memory_space<vmem>>, vector<1x16x8xf32>,
    return
  }
  func.func @transform_0(%arg0: i32, %arg1: i32) -> (i32, i32) {
    %c0_i32 = arith.constant 0 : i32
    %c0_i32_0 = arith.constant 0 : i32
    return %arg0, %c0_i32 : i32, i32
  }
  func.func @transform_1(%arg0: i32, %arg1: i32) -> (i32, i32, i32) {
    %c0_i32 = arith.constant 0 : i32
    %c0_i32_0 = arith.constant 0 : i32
    %c0_i32_1 = arith.constant 0 : i32
    return %arg1, %c0_i32, %c0_i32_0 : i32, i32, i32
  }
  func.func @transform_2(%arg0: i32, %arg1: i32) -> (i32, i32, i32) {
    %c0_i32 = arith.constant 0 : i32
    %c0_i32_0 = arith.constant 0 : i32
    %c0_i32_1 = arith.constant 0 : i32
    return %arg1, %c0_i32, %c0_i32_0 : i32, i32, i32
  }
  func.func @transform_3(%arg0: i32, %arg1: i32) -> (i32, i32, i32) {
    %c0_i32 = arith.constant 0 : i32
    %c0_i32_0 = arith.constant 0 : i32
    return %arg1, %arg0, %c0_i32 : i32, i32, i32
  }
}

</mosaic_0001>

<llo_original>
// kernel: tpu_custom_call.1
$region0: #{tpu_custom_call.1}
  #allocation0 [shape = 'u32[]', space=smem, size = 0x4, offset = 0x4, fixed_abs, tag = 'smem constant byte address 0x4 - core index']
  #allocation1 [shape = 'u32[144,128]{1,0:T(1,128)}', space=vmem, size = 0x12000, scoped, tag = 'internal scratch']
  %s0 = inlined_call_operand.vmem [shape: f32[16,32], index: 0, kind: input, shape index: {}]
  %s1 = inlined_call_operand.vmem [shape: f32[4,32,8], index: 1, kind: input, shape index: {}]
  %s2 = inlined_call_operand.vmem [shape: f32[4,1,8], index: 2, kind: input, shape index: {}]
  %s3 = inlined_call_operand.vmem [shape: f32[4,16,8], index: 3, kind: output, shape index: {}]
  %s4 = sld [smem:[#allocation0]]
  $region45: #{tpu_custom_call.1} parent=0
    _
  %s6 = ssub.s32 1, %s4
  %s7 = scalar_select 0, %s6, %s4
  loop: start=0, step=1, limit=6
  $region2: #{tpu_custom_call.1} parent=0 // loop_pre_header
    _
  $region3: #{tpu_custom_call.1} parent=0 // loop_header
    %s9 = sphi 0, %s13
    %p10 = scmp.ge.s32.totalorder %s9, 6
    %s16 = sphi 0, %s28
    %s17 = sphi 0, %s24
    %s18 = sphi 0, %s16
    %s19 = sphi 0, %s17
    %s20 = sphi 0, %s18
    %s21 = sphi 0, %s19
    %s31 = sphi 0, %s33
    %s34 = sphi 0, %s31
    %s35 = sphi 0, %s34
    %s51 = sphi 0, %s35
    %s57 = sphi 0, %s59
    %s60 = sphi 0, %s57
    %s61 = sphi 0, %s60
    %s77 = sphi 0, %s61
    %s83 = sphi 0, %s85
    %s86 = sphi 0, %s83
    %s87 = sphi 0, %s86
    %s103 = sphi 0, %s87
    %s111 = sphi 0, %s113
    %s114 = sphi 0, %s111
    %s115 = sphi 0, %s114
    %s131 = sphi 0, %s115
  $region4: #{tpu_custom_call.1} parent=0 // loop_header_branch
    %12 = sbr.rel (%p10) target = $region8
  $region5: #{tpu_custom_call.1} parent=0 // loop_body
    %s14 = ssub.s32 %s9, 1
    %s15 = ssub.s32 %s9, 2
    %s22 = sadd.s32 1, %s17
    %p23 = scmp.ge.s32.totalorder %s22, 4
    %s24 = scalar_select %p23, 0, %s22
    %s25 = sadd.s32 1, %s16
    %s26 = scalar_select %p23, %s25, %s16
    %p27 = scmp.ge.s32.totalorder %s26, 1
    %s28 = scalar_select %p27, 0, %s26
    %s29 = ssub.s32 %s16, %s28
    %p30 = scmp.eq.s32.totalorder %s29, 0
    %s32 = sadd.s32 %s31, 1
    %s33 = scalar_select %p30, %s31, %s32
    %p36 = pneg %p30
    %p37 = scmp.eq.s32.totalorder %s9, 3
    %p38 = por %p36, %p37
    %p39 = scmp.ne.s32.totalorder %s31, %s34
    %p40 = scmp.eq.s32.totalorder %s9, 0
    %p41 = por %p39, %p40
    %p42 = scmp.ne.s32.totalorder %s31, %s34
    %p43 = scmp.eq.s32.totalorder %s14, 3
    %p44 = por %p42, %p43
    %p45 = scmp.ne.s32.totalorder %s34, %s35
    %p46 = scmp.eq.s32.totalorder %s14, 0
    %p47 = por %p45, %p46
    %p48 = scmp.ne.s32.totalorder %s34, %s35
    %p49 = scmp.eq.s32.totalorder %s15, 3
    %p50 = por %p48, %p49
    %p52 = scmp.ne.s32.totalorder %s35, %s51
    %p53 = scmp.eq.s32.totalorder %s15, 0
    %p54 = por %p52, %p53
    %s55 = ssub.s32 %s17, %s24
    %p56 = scmp.eq.s32.totalorder %s55, 0
    %s58 = sadd.s32 %s57, 1
    %s59 = scalar_select %p56, %s57, %s58
    %p62 = pneg %p56
    %p63 = scmp.eq.s32.totalorder %s9, 3
    %p64 = por %p62, %p63
    %p65 = scmp.ne.s32.totalorder %s57, %s60
    %p66 = scmp.eq.s32.totalorder %s9, 0
    %p67 = por %p65, %p66
    %p68 = scmp.ne.s32.totalorder %s57, %s60
    %p69 = scmp.eq.s32.totalorder %s14, 3
    %p70 = por %p68, %p69
    %p71 = scmp.ne.s32.totalorder %s60, %s61
    %p72 = scmp.eq.s32.totalorder %s14, 0
    %p73 = por %p71, %p72
    %p74 = scmp.ne.s32.totalorder %s60, %s61
    %p75 = scmp.eq.s32.totalorder %s15, 3
    %p76 = por %p74, %p75
    %p78 = scmp.ne.s32.totalorder %s61, %s77
    %p79 = scmp.eq.s32.totalorder %s15, 0
    %p80 = por %p78, %p79
    %s81 = ssub.s32 %s17, %s24
    %p82 = scmp.eq.s32.totalorder %s81, 0
    %s84 = sadd.s32 %s83, 1
    %s85 = scalar_select %p82, %s83, %s84
    %p88 = pneg %p82
    %p89 = scmp.eq.s32.totalorder %s9, 3
    %p90 = por %p88, %p89
    %p91 = scmp.ne.s32.totalorder %s83, %s86
    %p92 = scmp.eq.s32.totalorder %s9, 0
    %p93 = por %p91, %p92
    %p94 = scmp.ne.s32.totalorder %s83, %s86
    %p95 = scmp.eq.s32.totalorder %s14, 3
    %p96 = por %p94, %p95
    %p97 = scmp.ne.s32.totalorder %s86, %s87
    %p98 = scmp.eq.s32.totalorder %s14, 0
    %p99 = por %p97, %p98
    %p100 = scmp.ne.s32.totalorder %s86, %s87
    %p101 = scmp.eq.s32.totalorder %s15, 3
    %p102 = por %p100, %p101
    %p104 = scmp.ne.s32.totalorder %s87, %s103
    %p105 = scmp.eq.s32.totalorder %s15, 0
    %p106 = por %p104, %p105
    %s107 = ssub.s32 %s17, %s24
    %s108 = ssub.s32 %s16, %s28
    %s109 = sor.u32 %s107, %s108
    %p110 = scmp.eq.s32.totalorder %s109, 0
    %s112 = sadd.s32 %s111, 1
    %s113 = scalar_select %p110, %s111, %s112
    %p116 = pneg %p110
    %p117 = scmp.eq.s32.totalorder %s9, 3
    %p118 = por %p116, %p117
    %p119 = scmp.ne.s32.totalorder %s111, %s114
    %p120 = scmp.eq.s32.totalorder %s9, 0
    %p121 = por %p119, %p120
    %p122 = scmp.ne.s32.totalorder %s111, %s114
    %p123 = scmp.eq.s32.totalorder %s14, 3
    %p124 = por %p122, %p123
    %p125 = scmp.ne.s32.totalorder %s114, %s115
    %p126 = scmp.eq.s32.totalorder %s14, 0
    %p127 = por %p125, %p126
    %p128 = scmp.ne.s32.totalorder %s114, %s115
    %p129 = scmp.eq.s32.totalorder %s15, 3
    %p130 = por %p128, %p129
    %p132 = scmp.ne.s32.totalorder %s115, %s131
    %p133 = scmp.eq.s32.totalorder %s15, 0
    %p134 = por %p132, %p133
    %p135 = scmp.le.s32.totalorder 1, %s9
    %p136 = scmp.lt.s32.totalorder %s9, 5
    %p137 = pnand %p135, %p136
    %p138 = pneg %p137
    // Predicated region
    $region9: #{tpu_custom_call.1} parent=5 // pred_check
      _
    $region10: #{tpu_custom_call.1} parent=5 // pred_check_branch
      %140 = sbr.rel (%p137) target = $region12
    $region11: #{tpu_custom_call.1} parent=5 // pred_region
      %s141 = ssub.s32 %s9, 1
      // Predicated region
      $region13: #{tpu_custom_call.1} parent=11 // pred_check
        %p142 = pneg %p47
      $region14: #{tpu_custom_call.1} parent=11 // pred_check_branch
        %144 = sbr.rel (%p142) target = $region16
      $region15: #{tpu_custom_call.1} parent=11 // pred_region
        %s145 = smul.u32 2, %s18
        %p146 = scmp.lt.s32.totalorder %s145, 1
        %s147 = scalar_select %p146, %s145, 1
        %s148 = smul.addr %s147, 8
        %s149 = scalar_lea.vmem %s0, %s148
        %s150 = smul.u32 2, %s18
      $region16: #{tpu_custom_call.1} parent=11 // pred_fallthru
        _
    $region12: #{tpu_custom_call.1} parent=5 // pred_fallthru
      _
    %p151 = scmp.lt.s32.totalorder %s9, 4
    // Predicated region
    $region17: #{tpu_custom_call.1} parent=5 // pred_check
      %p152 = pneg %p151
    $region18: #{tpu_custom_call.1} parent=5 // pred_check_branch
      %154 = sbr.rel (%p152) target = $region20
    $region19: #{tpu_custom_call.1} parent=5 // pred_region
      // Predicated region
      $region21: #{tpu_custom_call.1} parent=19 // pred_check
        %p155 = pneg %p67
      $region22: #{tpu_custom_call.1} parent=19 // pred_check_branch
        %157 = sbr.rel (%p155) target = $region24
      $region23: #{tpu_custom_call.1} parent=19 // pred_region
        %p158 = scmp.lt.s32.totalorder %s17, 3
        %s159 = scalar_select %p158, %s17, 3
        %s160 = smul.addr %s159, 4
        %s161 = smul.addr %s160, 8
        %s162 = scalar_lea.vmem %s1, %s161
      $region24: #{tpu_custom_call.1} parent=19 // pred_fallthru
        _
      // Predicated region
      $region25: #{tpu_custom_call.1} parent=19 // pred_check
        %p163 = pneg %p93
      $region26: #{tpu_custom_call.1} parent=19 // pred_check_branch
        %165 = sbr.rel (%p163) target = $region28
      $region27: #{tpu_custom_call.1} parent=19 // pred_region
        %p166 = scmp.lt.s32.totalorder %s17, 3
        %s167 = scalar_select %p166, %s17, 3
        %s168 = scalar_lea.vmem %s2, %s167
      $region28: #{tpu_custom_call.1} parent=19 // pred_fallthru
        _
    $region20: #{tpu_custom_call.1} parent=5 // pred_fallthru
      _
    %p169 = scmp.le.s32.totalorder 1, %s9
    %p170 = scmp.lt.s32.totalorder %s9, 5
    %p171 = pnand %p169, %p170
    %p172 = pneg %p171
    // Predicated region
    $region29: #{tpu_custom_call.1} parent=5 // pred_check
      _
    $region30: #{tpu_custom_call.1} parent=5 // pred_check_branch
      %174 = sbr.rel (%p171) target = $region32
    $region31: #{tpu_custom_call.1} parent=5 // pred_region
      %s175 = ssub.s32 %s9, 1
      %s176 = smul.u32 2, %s18
      %p177 = scmp.lt.s32.totalorder %s176, 1
      %s178 = scalar_select %p177, %s176, 1
      %s179 = smul.addr %s178, 8
      %s180 = scalar_lea.vmem %s0, %s179
      %p181 = pneg %p47
      %p182 = pneg %p44
      %p183 = scmp.lt.s32.totalorder %s19, 3
      %s184 = scalar_select %p183, %s19, 3
      %s185 = smul.addr %s184, 4
      %s186 = smul.addr %s185, 8
      %s187 = scalar_lea.vmem %s1, %s186
      %p188 = pneg %p73
      %p189 = pneg %p70
      %p190 = scmp.lt.s32.totalorder %s19, 3
      %s191 = scalar_select %p190, %s19, 3
      %s192 = scalar_lea.vmem %s2, %s191
      %p193 = pneg %p99
      %p194 = pneg %p96
      %p195 = pneg %p127
      %p196 = pneg %p124
      %s197 = smul.u32 2, %s18
      %p198 = scmp.lt.s32.totalorder %s19, 3
      %s199 = scalar_select %p198, %s19, 3
      %p200 = scmp.lt.s32.totalorder %s197, 1
      %s201 = scalar_select %p200, %s197, 1
      %s202 = smul.addr %s199, 2
      %s203 = sadd.s32 %s201, %s202
      %s204 = smul.addr %s203, 8
      %s205 = scalar_lea.vmem %s3, %s204
      %s206 = smul.u32 2, %s18
      %p207 = scmp.lt.s32.totalorder %s206, 1
      %s208 = scalar_select %p207, %s206, 1
      %s209 = smul.addr %s208, 8
      %s210 = scalar_lea.vmem %s0, %s209
      %s211 = smul.u32 2, %s18
      %p212 = scmp.lt.s32.totalorder %s19, 3
      %s213 = scalar_select %p212, %s19, 3
      %s214 = smul.addr %s213, 4
      %s215 = smul.addr %s214, 8
      %s216 = scalar_lea.vmem %s1, %s215
      %p217 = scmp.lt.s32.totalorder %s19, 3
      %s218 = scalar_select %p217, %s19, 3
      %s219 = scalar_lea.vmem %s2, %s218
      %s220 = smul.u32 2, %s18
      %p221 = scmp.lt.s32.totalorder %s19, 3
      %s222 = scalar_select %p221, %s19, 3
      %p223 = scmp.lt.s32.totalorder %s220, 1
      %s224 = scalar_select %p223, %s220, 1
      %s225 = smul.addr %s222, 2
      %s226 = sadd.s32 %s224, %s225
      %s227 = smul.addr %s226, 8
      %s228 = scalar_lea.vmem %s3, %s227
      %s229 = smul.u32 2, %s18
      %v230 = vld [vmem:[%s210] sm:$0xff]
      %v231 = vld [vmem:[%s210 + $0x8] sm:$0xff]
      %v232 = vld [vmem:[%s216] sm:$0xff]
      %v233 = vld [vmem:[%s216 + $0x8] sm:$0xff]
      %v234 = vld [vmem:[%s216 + $0x10] sm:$0xff]
      %v235 = vld [vmem:[%s216 + $0x18] sm:$0xff]
      %v236 = vld [vmem:[%s219] sm:$0x1]
      %v238 = vlaneseq
      %v239 = vshrl.u32 %v238, 7
      %v240 = vsub.s32 0, %v239
      %v241 = vrot.slane %v236, %v240
      %vm243 = vcmask 261120
      %v245 = vsel %vm243, %v230, 0
      %v248 = vsel %vm243, %v231, 0
      %250 = vmatprep.subr.mxu0 0.0
      %251 = vmatpush1.msra.mxu0 %v232
      %252 = vmatprep.subr.mxu0 0.0
      %253 = vmatpush1.msra.mxu0 %v233
      %254 = vmatprep.subr.mxu0 0.0
      %255 = vmatpush1.msra.mxu0 %v234
      %256 = vmatprep.subr.mxu0 0.0
      %257 = vmatpush1.msra.mxu0 %v235
      %258 = vmatprep.subr.mxu0 0.0
      %259 = vmatpush1.msra.mxu0 0.0
      %260 = vmatprep.subr.mxu0 0.0
      %261 = vmatpush1.msra.mxu0 0.0
      %262 = vmatprep.subr.mxu0 0.0
      %263 = vmatpush1.msra.mxu0 0.0
      %264 = vmatprep.subr.mxu0 0.0
      %265 = vmatpush1.msra.mxu0 0.0
      %266 = vmatprep.subr.mxu0 0.0
      %267 = vmatpush1.msra.mxu0 0.0
      %268 = vmatprep.subr.mxu0 0.0
      %269 = vmatpush1.msra.mxu0 0.0
      %270 = vmatprep.subr.mxu0 0.0
      %271 = vmatpush1.msra.mxu0 0.0
      %272 = vmatprep.subr.mxu0 0.0
      %273 = vmatpush1.msra.mxu0 0.0
      %274 = vmatprep.subr.mxu0 0.0
      %275 = vmatpush1.msra.mxu0 0.0
      %276 = vmatprep.subr.mxu0 0.0
      %277 = vmatpush1.msra.mxu0 0.0
      %278 = vmatprep.subr.mxu0 0.0
      %279 = vmatpush1.msra.mxu0 0.0
      %280 = vmatprep.subr.mxu0 0.0
      %281 = vmatpush1.msra.mxu0 0.0
      %282 = vmatprep.subr.mxu0 0.0
      %283 = vmatpush1.msra.mxu0 0.0
      %284 = vmatprep.subr.mxu0 0.0
      %285 = vmatpush1.msra.mxu0 0.0
      %286 = vmatprep.subr.mxu0 0.0
      %287 = vmatpush1.msra.mxu0 0.0
      %288 = vmatprep.subr.mxu0 0.0
      %289 = vmatpush1.msra.mxu0 0.0
      %290 = vmatprep.subr.mxu0 0.0
      %291 = vmatpush1.msra.mxu0 0.0
      %292 = vmatprep.subr.mxu0 0.0
      %293 = vmatpush1.msra.mxu0 0.0
      %294 = vmatprep.subr.mxu0 0.0
      %295 = vmatpush1.msra.mxu0 0.0
      %296 = vmatprep.subr.mxu0 0.0
      %297 = vmatpush1.msra.mxu0 0.0
      %298 = vmatprep.subr.mxu0 0.0
      %299 = vmatpush1.msra.mxu0 0.0
      %300 = vmatprep.subr.mxu0 0.0
      %301 = vmatpush1.msra.mxu0 0.0
      %302 = vmatprep.subr.mxu0 0.0
      %303 = vmatpush1.msra.mxu0 0.0
      %304 = vmatprep.subr.mxu0 0.0
      %305 = vmatpush1.msra.mxu0 0.0
      %306 = vmatprep.subr.mxu0 0.0
      %307 = vmatpush1.msra.mxu0 0.0
      %308 = vmatprep.subr.mxu0 0.0
      %309 = vmatpush1.msra.mxu0 0.0
      %310 = vmatprep.subr.mxu0 0.0
      %311 = vmatpush1.msra.mxu0 0.0
      %312 = vmatprep.subr.mxu0 0.0
      %313 = vmatpush1.msra.mxu0 0.0
      %314 = vmatprep.mubr.f32.mxu0 0.0
      %315 = vmatmul.mubr.f32.gmra.mrb[0].mxu0 %v245
      %v316 = vpop.f32.mrb[0].mxu0
      %v317 = vadd.f32 %v241, %v316
      %v318 = vpop.f32.mrb[0].mxu0
      %319 = vmatprep.mubr.f32.mxu0 0.0
      %320 = vmatmul.mubr.f32.gmra.mrb[0].mxu0 %v248
      %v321 = vpop.f32.mrb[0].mxu0
      %v322 = vadd.f32 %v241, %v321
      %v323 = vpop.f32.mrb[0].mxu0
      %324 = vdwg.mxu0
      %vm325 = vcmask 64512
      %326 = vst.msk [vmem:[%s228] sm:$0xff] %vm325, %v317
      %327 = vst.msk [vmem:[%s228 + $0x8] sm:$0xff] %vm325, %v322
      %s328 = smul.u32 2, %s18
      %p329 = scmp.lt.s32.totalorder %s19, 3
      %s330 = scalar_select %p329, %s19, 3
      %p331 = scmp.lt.s32.totalorder %s328, 1
      %s332 = scalar_select %p331, %s328, 1
      %s333 = smul.addr %s330, 2
      %s334 = sadd.s32 %s332, %s333
      %s335 = smul.addr %s334, 8
      %s336 = scalar_lea.vmem %s3, %s335
      // Predicated region
      $region33: #{tpu_custom_call.1} parent=31 // pred_check
        %p337 = pneg %p124
      $region34: #{tpu_custom_call.1} parent=31 // pred_check_branch
        %339 = sbr.rel (%p337) target = $region36
      $region35: #{tpu_custom_call.1} parent=31 // pred_region
        %s340 = smul.u32 2, %s18
      $region36: #{tpu_custom_call.1} parent=31 // pred_fallthru
        _
    $region32: #{tpu_custom_call.1} parent=5 // pred_fallthru
      _
    %p341 = scmp.le.s32.totalorder 2, %s9
    // Predicated region
    $region37: #{tpu_custom_call.1} parent=5 // pred_check
      %p342 = pneg %p341
    $region38: #{tpu_custom_call.1} parent=5 // pred_check_branch
      %344 = sbr.rel (%p342) target = $region40
    $region39: #{tpu_custom_call.1} parent=5 // pred_region
      %s345 = ssub.s32 %s9, 2
      // Predicated region
      $region41: #{tpu_custom_call.1} parent=39 // pred_check
        %p346 = pneg %p130
      $region42: #{tpu_custom_call.1} parent=39 // pred_check_branch
        %348 = sbr.rel (%p346) target = $region44
      $region43: #{tpu_custom_call.1} parent=39 // pred_region
        %s349 = smul.u32 2, %s20
        %p350 = scmp.lt.s32.totalorder %s21, 3
        %s351 = scalar_select %p350, %s21, 3
        %p352 = scmp.lt.s32.totalorder %s349, 1
        %s353 = scalar_select %p352, %s349, 1
        %s354 = smul.addr %s351, 2
        %s355 = sadd.s32 %s353, %s354
        %s356 = smul.addr %s355, 8
        %s357 = scalar_lea.vmem %s3, %s356
      $region44: #{tpu_custom_call.1} parent=39 // pred_fallthru
        _
    $region40: #{tpu_custom_call.1} parent=5 // pred_fallthru
      _
  $region6: #{tpu_custom_call.1} parent=0 // loop_footer
    %s13 = sadd.s32 1, %s9
  $region7: #{tpu_custom_call.1} parent=0 // loop_footer_branch
    %8 = sbr.rel target = $region3
  $region8: #{tpu_custom_call.1} parent=0 // loop_exit
    _

</llo_original>
